<compile_context>
chip_gen: v7x
topology: tpu7x:2x2x1
jax: 0.10.0
libtpu: 0.0.40
codegen_flags: <defaults>
</compile_context>

<pallas_src>
import functools

import jax
import jax.numpy as jnp
import numpy as np
from jax.experimental import pallas as pl
from jax.experimental.pallas import tpu as pltpu


# ---------------------------------------------------------------------------
# Fused kernel: one (image, row-strip) per grid step.
# ---------------------------------------------------------------------------
def _dncnn_fused_kernel(x_ref, w1t_ref, b1_ref, w2_ref, mask_ref, b2_ref,
                        o_ref, xt_ref, hflat_ref, *, R, W, C, S, neg_slope):
    # x_ref    : (1, 1, PF)      flat zero-padded input strip (R+4 rows * (W+2) + 2)
    # w1t_ref  : (C, 9)          layer-1 weights, (channel, tap)
    # b1_ref   : (C, 1)          layer-1 bias
    # w2_ref   : (9, C)          layer-2 weights, (tap, channel)   [hidden dtype]
    # mask_ref : (1, Mext)       1.0 on valid columns, 0.0 on the 2 halo cols/row
    # b2_ref   : (1,)            layer-2 bias (SMEM scalar)
    # o_ref    : (1, 1, Mout)    lane-dense flat output strip
    # xt_ref   : (9, Mext)       VMEM scratch: im2col taps
    # hflat_ref: (C, Mext + 2)   VMEM scratch: padded hidden activation (bf16)
    f32 = jnp.float32
    Wp = W + 2
    M_ext = (R + 2) * Wp          # hidden positions incl. 1 recomputed halo row/side
    M_out = R * Wp                # output positions of this strip
    offs = [kh * Wp + kw for kh in range(3) for kw in range(3)]   # flat tap offsets

    # ---- layer 1: im2col + one MXU matmul (C,9)@(9,Mext), f32 accumulate ----
    for t, off in enumerate(offs):                       # 9 lane-shifted 1-ch copies
        xt_ref[t:t + 1, :] = x_ref[0, 0:1, off:off + M_ext]
    hidden = jnp.dot(w1t_ref[...], xt_ref[...], preferred_element_type=f32)
    hidden = hidden + b1_ref[...]                        # (C,1) broadcast, once
    hidden = jnp.where(hidden >= 0.0, hidden, neg_slope * hidden)   # LeakyReLU(0.2)
    hidden = hidden * mask_ref[...]                      # zero the 2 halo cols per row

    # Padded hidden -> persistent VMEM scratch in bf16 (lane offset +1).
    # Only the two 1-lane border columns are zeroed (no full-buffer zero pass).
    hflat_ref[:, 1:1 + M_ext] = hidden.astype(hflat_ref.dtype)
    zcol = jnp.zeros((C, 1), hflat_ref.dtype)
    hflat_ref[:, 0:1] = zcol
    hflat_ref[:, 1 + M_ext:2 + M_ext] = zcol

    # Recomputed halo hidden rows falling OUTSIDE the image must be the zero-pad
    # row of layer 2.  Done every grid step (scratch persists across steps).
    s = pl.program_id(0) % S
    @pl.when(s == 0)
    def _():
        hflat_ref[:, 1:1 + Wp] = jnp.zeros((C, Wp), hflat_ref.dtype)

    @pl.when(s == S - 1)
    def _():
        hflat_ref[:, 1 + (R + 1) * Wp:1 + (R + 2) * Wp] = jnp.zeros(
            (C, Wp), hflat_ref.dtype)

    # ---- layer 2: one MXU matmul (9,C)@(C,Mext+2), then 9 lane-shifted adds ----
    partial = jnp.dot(w2_ref[...], hflat_ref[...], preferred_element_type=f32)
    out = partial[0:1, offs[0]:offs[0] + M_out]
    for t in range(1, 9):
        out = out + partial[t:t + 1, offs[t]:offs[t] + M_out]
    out = out + b2_ref[0]                                # SMEM scalar bias
    o_ref[0] = out.astype(o_ref.dtype)                   # lane-dense flat store


def _pick_strip_rows(H):
    # Bound the padded-hidden scratch to (C, (R+2)*(W+2)+2) bf16 per strip so it
    # fits v7x's 64 MiB VMEM / the default scoped limits with pipelining headroom.
    if H <= 64:
        return H
    for r in (64, 32, 16, 8):
        if H % r == 0:
            return r
    return H


# ---------------------------------------------------------------------------
# DnCNN forward (NCHW in / NCHW out, like the PyTorch module)
# ---------------------------------------------------------------------------
def dncnn_forward(x_nchw, params, *, strip_rows=None, hidden_dtype=jnp.bfloat16):
    N, Cin, H, W = x_nchw.shape
    assert Cin == 1, "kernel specializes the image_channels == 1 path"
    C = params["w1"].shape[-1]                           # n_channels
    R = _pick_strip_rows(H) if strip_rows is None else strip_rows
    assert H % R == 0, "strip_rows must divide H"
    S = H // R
    Wp = W + 2
    M_ext = (R + 2) * Wp
    M_out = R * Wp
    PF = (R + 4) * Wp + 2                                # flat input strip (+ wrap slack)
    PH = M_ext + 2                                       # flat padded hidden

    # Weight repack (tap-major).
    w1t = params["w1"].reshape(9, C).T.astype(jnp.float32)   # (C, 9)
    b1 = params["b1"].reshape(C, 1).astype(jnp.float32)      # (C, 1)
    w2 = params["w2"].reshape(9, C).astype(hidden_dtype)     # (9, C)
    b2 = params["b2"].reshape(1).astype(jnp.float32)         # (1,) SMEM scalar

    # Input prep on the 1-channel image (negligible vs. the resident 64-ch hidden):
    # zero-pad 2 rows / 1 col, cut overlapping row strips (halo rows duplicated so
    # strips are independent / "parallel"), flatten row-major.
    xpad = jnp.pad(x_nchw[:, 0], ((0, 0), (2, 2), (1, 1)))   # (N, H+4, W+2)
    xs = jnp.stack([xpad[:, s * R:s * R + R + 4, :] for s in range(S)], axis=1)
    xs = xs.reshape(N * S, (R + 4) * Wp)
    xs = jnp.pad(xs, ((0, 0), (0, PF - (R + 4) * Wp)))       # wrap slack
    xs = xs.reshape(N * S, 1, PF).astype(jnp.float32)

    # 0/1 mask killing the 2 halo columns of each flattened row (built host-side).
    q = np.arange(M_ext)
    col_mask = jnp.asarray(((q % Wp) < W).astype(np.float32)[None, :])   # (1, Mext)

    kernel = functools.partial(_dncnn_fused_kernel, R=R, W=W, C=C, S=S,
                               neg_slope=0.2)
    out_flat = pl.pallas_call(
        kernel,
        out_shape=jax.ShapeDtypeStruct((N * S, 1, M_out), x_nchw.dtype),
        grid=(N * S,),
        in_specs=[
            pl.BlockSpec((1, 1, PF), lambda g: (g, 0, 0)),        # input strip
            pl.BlockSpec((C, 9), lambda g: (0, 0)),               # w1^T
            pl.BlockSpec((C, 1), lambda g: (0, 0)),               # b1
            pl.BlockSpec((9, C), lambda g: (0, 0)),               # w2
            pl.BlockSpec((1, M_ext), lambda g: (0, 0)),           # column mask
            pl.BlockSpec(memory_space=pltpu.MemorySpace.SMEM),    # b2 scalar
        ],
        out_specs=pl.BlockSpec((1, 1, M_out), lambda g: (g, 0, 0)),
        scratch_shapes=[
            pltpu.VMEM((9, M_ext), jnp.float32),      # im2col taps
            pltpu.VMEM((C, PH), hidden_dtype),        # padded hidden (bf16)
        ],
        compiler_params=pltpu.CompilerParams(dimension_semantics=("parallel",)),
    )(xs, w1t, b1, w2, col_mask, b2)

    # Strip the 2 halo columns per row and reassemble NCHW (1-channel; cheap).
    out = out_flat.reshape(N, S, R, Wp)[:, :, :, :W].reshape(N, 1, H, W)
    return out


# ---------------------------------------------------------------------------
# Parameter init (matches nn.init.orthogonal_ + zero bias, deterministic)
# ---------------------------------------------------------------------------
def orthogonal_conv_weight(key, out_ch, in_ch, k):
    rows = out_ch
    cols = in_ch * k * k
    shape = (rows, cols) if rows >= cols else (cols, rows)
    flat = jax.random.normal(key, shape, jnp.float32)
    qm, r = jnp.linalg.qr(flat)
    qm = qm * jnp.sign(jnp.diag(r))
    if rows < cols:
        qm = qm.T
    w_oihw = qm.reshape(out_ch, in_ch, k, k)
    return jnp.transpose(w_oihw, (2, 3, 1, 0))          # HWIO


# ---------------------------------------------------------------------------
# Pure-JAX reference for correctness check
# ---------------------------------------------------------------------------
def _conv_ref(x_nhwc, w_hwio, bias):
    y = jax.lax.conv_general_dilated(
        x_nhwc, w_hwio, window_strides=(1, 1), padding="SAME",
        dimension_numbers=("NHWC", "HWIO", "NHWC"))
    return y + bias


def dncnn_ref(x_nchw, params):
    x = jnp.transpose(x_nchw, (0, 2, 3, 1))
    x = _conv_ref(x, params["w1"], params["b1"])
    x = jnp.where(x >= 0, x, 0.2 * x)
    x = _conv_ref(x, params["w2"], params["b2"])
    return jnp.transpose(x, (0, 3, 1, 2))


if __name__ == "__main__":
    image_channels = 1
    n_channels = 64
    N, H, W = 2, 16, 16

    key = jax.random.PRNGKey(0)
    k_x, k_w1, k_w2 = jax.random.split(key, 3)

    params = {
        "w1": orthogonal_conv_weight(k_w1, n_channels, image_channels, 3),
        "b1": jnp.zeros((n_channels,), jnp.float32),
        "w2": orthogonal_conv_weight(k_w2, image_channels, n_channels, 3),
        "b2": jnp.zeros((image_channels,), jnp.float32),
    }

    x = jax.random.normal(k_x, (N, image_channels, H, W), jnp.float32)

    ref = jax.block_until_ready(dncnn_ref(x, params))

    # Default path: bf16 hidden scratch, single strip per image at this size.
    out = jax.block_until_ready(jax.jit(dncnn_forward)(x, params))
    assert out.shape == (N, image_channels, H, W)
    np.testing.assert_allclose(np.asarray(out), np.asarray(ref), atol=3e-2, rtol=3e-2)

    # Row-strip path (exercises halo recomputation / masking with S=2 strips).
    out_strips = jax.block_until_ready(
        jax.jit(functools.partial(dncnn_forward, strip_rows=8))(x, params))
    np.testing.assert_allclose(np.asarray(out_strips), np.asarray(ref),
                               atol=3e-2, rtol=3e-2)

    print("KERNEL_OK")
</pallas_src>

<mosaic_0001>
module attributes {stable_mosaic.version = 11 : i64} {
  func.func @_dncnn_fused_kernel(%arg0: i32, %arg1: memref<1x1x362xf32, #tpu.memory_space<vmem>>, %arg2: memref<64x9xf32, #tpu.memory_space<vmem>>, %arg3: memref<64x1xf32, #tpu.memory_space<vmem>>, %arg4: memref<9x64xbf16, #tpu.memory_space<vmem>>, %arg5: memref<1x324xf32, #tpu.memory_space<vmem>>, %arg6: memref<1xf32, #tpu.memory_space<smem>>, %arg7: memref<1x1x288xf32, #tpu.memory_space<vmem>>, %arg8: memref<9x324xf32, #tpu.memory_space<vmem>>, %arg9: memref<64x326xbf16, #tpu.memory_space<vmem>>) attributes {dimension_semantics = [#tpu.dimension_semantics<parallel>], iteration_bounds = array<i64: 2>, scalar_prefetch = 0 : i64, scratch_operands = 2 : i64, tpu.core_type = #tpu.core_type<tc>, window_params = [{transform_indices = @transform_0, window_bounds = array<i64: 1, 1, 362>}, {pipeline_mode = #tpu.pipeline_mode<synchronous>, transform_indices = @transform_1, window_bounds = array<i64: 64, 9>}, {pipeline_mode = #tpu.pipeline_mode<synchronous>, transform_indices = @transform_2, window_bounds = array<i64: 64, 1>}, {pipeline_mode = #tpu.pipeline_mode<synchronous>, transform_indices = @transform_3, window_bounds = array<i64: 9, 64>}, {pipeline_mode = #tpu.pipeline_mode<synchronous>, transform_indices = @transform_4, window_bounds = array<i64: 1, 324>}, {transform_indices = @transform_5, window_bounds = array<i64: 1>}, {transform_indices = @transform_6, window_bounds = array<i64: 1, 1, 288>}]} {
    %c0 = arith.constant 0 : index
    %c0_0 = arith.constant 0 : index
    %c0_1 = arith.constant 0 : index
    %0 = vector.load %arg1[%c0, %c0_0, %c0_1] : memref<1x1x362xf32, #tpu.memory_space<vmem>>, vector<1x1x324xf32>
    %1 = vector.shape_cast %0 : vector<1x1x324xf32> to vector<1x324xf32>
    %c0_2 = arith.constant 0 : index
    %c0_3 = arith.constant 0 : index
    %2 = vector.load %arg8[%c0_2, %c0_3] : memref<9x324xf32, #tpu.memory_space<vmem>>, vector<1x324xf32>
    tpu.vector_store %arg8[%c0_2, %c0_3], %1 {strides = array<i32>} : memref<9x324xf32, #tpu.memory_space<vmem>>, vector<1x324xf32>,
    %c0_4 = arith.constant 0 : index
    %c0_5 = arith.constant 0 : index
    %c1 = arith.constant 1 : index
    %3 = vector.load %arg1[%c0_4, %c0_5, %c1] : memref<1x1x362xf32, #tpu.memory_space<vmem>>, vector<1x1x324xf32>
    %4 = vector.shape_cast %3 : vector<1x1x324xf32> to vector<1x324xf32>
    %c1_6 = arith.constant 1 : index
    %c0_7 = arith.constant 0 : index
    %5 = vector.load %arg8[%c1_6, %c0_7] : memref<9x324xf32, #tpu.memory_space<vmem>>, vector<1x324xf32>
    tpu.vector_store %arg8[%c1_6, %c0_7], %4 {strides = array<i32>} : memref<9x324xf32, #tpu.memory_space<vmem>>, vector<1x324xf32>,
    %c0_8 = arith.constant 0 : index
    %c0_9 = arith.constant 0 : index
    %c2 = arith.constant 2 : index
    %6 = vector.load %arg1[%c0_8, %c0_9, %c2] : memref<1x1x362xf32, #tpu.memory_space<vmem>>, vector<1x1x324xf32>
    %7 = vector.shape_cast %6 : vector<1x1x324xf32> to vector<1x324xf32>
    %c2_10 = arith.constant 2 : index
    %c0_11 = arith.constant 0 : index
    %8 = vector.load %arg8[%c2_10, %c0_11] : memref<9x324xf32, #tpu.memory_space<vmem>>, vector<1x324xf32>
    tpu.vector_store %arg8[%c2_10, %c0_11], %7 {strides = array<i32>} : memref<9x324xf32, #tpu.memory_space<vmem>>, vector<1x324xf32>,
    %c0_12 = arith.constant 0 : index
    %c0_13 = arith.constant 0 : index
    %c18 = arith.constant 18 : index
    %9 = vector.load %arg1[%c0_12, %c0_13, %c18] : memref<1x1x362xf32, #tpu.memory_space<vmem>>, vector<1x1x324xf32>
    %10 = vector.shape_cast %9 : vector<1x1x324xf32> to vector<1x324xf32>
    %c3 = arith.constant 3 : index
    %c0_14 = arith.constant 0 : index
    %11 = vector.load %arg8[%c3, %c0_14] : memref<9x324xf32, #tpu.memory_space<vmem>>, vector<1x324xf32>
    tpu.vector_store %arg8[%c3, %c0_14], %10 {strides = array<i32>} : memref<9x324xf32, #tpu.memory_space<vmem>>, vector<1x324xf32>,
    %c0_15 = arith.constant 0 : index
    %c0_16 = arith.constant 0 : index
    %c19 = arith.constant 19 : index
    %12 = vector.load %arg1[%c0_15, %c0_16, %c19] : memref<1x1x362xf32, #tpu.memory_space<vmem>>, vector<1x1x324xf32>
    %13 = vector.shape_cast %12 : vector<1x1x324xf32> to vector<1x324xf32>
    %c4 = arith.constant 4 : index
    %c0_17 = arith.constant 0 : index
    %14 = vector.load %arg8[%c4, %c0_17] : memref<9x324xf32, #tpu.memory_space<vmem>>, vector<1x324xf32>
    tpu.vector_store %arg8[%c4, %c0_17], %13 {strides = array<i32>} : memref<9x324xf32, #tpu.memory_space<vmem>>, vector<1x324xf32>,
    %c0_18 = arith.constant 0 : index
    %c0_19 = arith.constant 0 : index
    %c20 = arith.constant 20 : index
    %15 = vector.load %arg1[%c0_18, %c0_19, %c20] : memref<1x1x362xf32, #tpu.memory_space<vmem>>, vector<1x1x324xf32>
    %16 = vector.shape_cast %15 : vector<1x1x324xf32> to vector<1x324xf32>
    %c5 = arith.constant 5 : index
    %c0_20 = arith.constant 0 : index
    %17 = vector.load %arg8[%c5, %c0_20] : memref<9x324xf32, #tpu.memory_space<vmem>>, vector<1x324xf32>
    tpu.vector_store %arg8[%c5, %c0_20], %16 {strides = array<i32>} : memref<9x324xf32, #tpu.memory_space<vmem>>, vector<1x324xf32>,
    %c0_21 = arith.constant 0 : index
    %c0_22 = arith.constant 0 : index
    %c36 = arith.constant 36 : index
    %18 = vector.load %arg1[%c0_21, %c0_22, %c36] : memref<1x1x362xf32, #tpu.memory_space<vmem>>, vector<1x1x324xf32>
    %19 = vector.shape_cast %18 : vector<1x1x324xf32> to vector<1x324xf32>
    %c6 = arith.constant 6 : index
    %c0_23 = arith.constant 0 : index
    %20 = vector.load %arg8[%c6, %c0_23] : memref<9x324xf32, #tpu.memory_space<vmem>>, vector<1x324xf32>
    tpu.vector_store %arg8[%c6, %c0_23], %19 {strides = array<i32>} : memref<9x324xf32, #tpu.memory_space<vmem>>, vector<1x324xf32>,
    %c0_24 = arith.constant 0 : index
    %c0_25 = arith.constant 0 : index
    %c37 = arith.constant 37 : index
    %21 = vector.load %arg1[%c0_24, %c0_25, %c37] : memref<1x1x362xf32, #tpu.memory_space<vmem>>, vector<1x1x324xf32>
    %22 = vector.shape_cast %21 : vector<1x1x324xf32> to vector<1x324xf32>
    %c7 = arith.constant 7 : index
    %c0_26 = arith.constant 0 : index
    %23 = vector.load %arg8[%c7, %c0_26] : memref<9x324xf32, #tpu.memory_space<vmem>>, vector<1x324xf32>
    tpu.vector_store %arg8[%c7, %c0_26], %22 {strides = array<i32>} : memref<9x324xf32, #tpu.memory_space<vmem>>, vector<1x324xf32>,
    %c0_27 = arith.constant 0 : index
    %c0_28 = arith.constant 0 : index
    %c38 = arith.constant 38 : index
    %24 = vector.load %arg1[%c0_27, %c0_28, %c38] : memref<1x1x362xf32, #tpu.memory_space<vmem>>, vector<1x1x324xf32>
    %25 = vector.shape_cast %24 : vector<1x1x324xf32> to vector<1x324xf32>
    %c8 = arith.constant 8 : index
    %c0_29 = arith.constant 0 : index
    %26 = vector.load %arg8[%c8, %c0_29] : memref<9x324xf32, #tpu.memory_space<vmem>>, vector<1x324xf32>
    tpu.vector_store %arg8[%c8, %c0_29], %25 {strides = array<i32>} : memref<9x324xf32, #tpu.memory_space<vmem>>, vector<1x324xf32>,
    %c0_30 = arith.constant 0 : index
    %c0_31 = arith.constant 0 : index
    %27 = vector.load %arg2[%c0_30, %c0_31] : memref<64x9xf32, #tpu.memory_space<vmem>>, vector<64x9xf32>
    %c0_32 = arith.constant 0 : index
    %c0_33 = arith.constant 0 : index
    %28 = vector.load %arg8[%c0_32, %c0_33] : memref<9x324xf32, #tpu.memory_space<vmem>>, vector<9x324xf32>
    %cst = arith.constant dense<0.000000e+00> : vector<64x324xf32>
    %29 = tpu.matmul %27, %28, %cst {dimension_numbers = #tpu.dot_dimension_numbers<[1], [0], [0], [1], [0, 0, 1, 1], [], []>} : vector<64x9xf32>, vector<9x324xf32>, vector<64x324xf32> -> vector<64x324xf32>
    %c0_34 = arith.constant 0 : index
    %c0_35 = arith.constant 0 : index
    %30 = vector.load %arg3[%c0_34, %c0_35] : memref<64x1xf32, #tpu.memory_space<vmem>>, vector<64x1xf32>
    %31 = vector.broadcast %30 : vector<64x1xf32> to vector<64x324xf32>
    %32 = arith.addf %29, %31 : vector<64x324xf32>
    %cst_36 = arith.constant 0.000000e+00 : f32
    %33 = vector.broadcast %cst_36 : f32 to vector<64x324xf32>
    %34 = arith.cmpf oge, %32, %33 : vector<64x324xf32>
    %cst_37 = arith.constant 2.000000e-01 : f32
    %35 = vector.broadcast %cst_37 : f32 to vector<64x324xf32>
    %36 = arith.mulf %35, %32 : vector<64x324xf32>
    %37 = arith.select %34, %32, %36 : vector<64x324xi1>, vector<64x324xf32>
    %c0_38 = arith.constant 0 : index
    %c0_39 = arith.constant 0 : index
    %38 = vector.load %arg5[%c0_38, %c0_39] : memref<1x324xf32, #tpu.memory_space<vmem>>, vector<1x324xf32>
    %39 = vector.broadcast %38 : vector<1x324xf32> to vector<64x324xf32>
    %40 = arith.mulf %37, %39 : vector<64x324xf32>
    %41 = arith.truncf %40 : vector<64x324xf32> to vector<64x324xbf16>
    %c0_40 = arith.constant 0 : index
    %c1_41 = arith.constant 1 : index
    %42 = vector.load %arg9[%c0_40, %c1_41] : memref<64x326xbf16, #tpu.memory_space<vmem>>, vector<64x324xbf16>
    tpu.vector_store %arg9[%c0_40, %c1_41], %41 {strides = array<i32>} : memref<64x326xbf16, #tpu.memory_space<vmem>>, vector<64x324xbf16>,
    %cst_42 = arith.constant 0.000000e+00 : bf16
    %43 = vector.broadcast %cst_42 : bf16 to vector<64x1xbf16>
    %c0_43 = arith.constant 0 : index
    %c0_44 = arith.constant 0 : index
    %44 = vector.load %arg9[%c0_43, %c0_44] : memref<64x326xbf16, #tpu.memory_space<vmem>>, vector<64x1xbf16>
    tpu.vector_store %arg9[%c0_43, %c0_44], %43 {strides = array<i32>} : memref<64x326xbf16, #tpu.memory_space<vmem>>, vector<64x1xbf16>,
    %c0_45 = arith.constant 0 : index
    %c325 = arith.constant 325 : index
    %45 = vector.load %arg9[%c0_45, %c325] : memref<64x326xbf16, #tpu.memory_space<vmem>>, vector<64x1xbf16>
    tpu.vector_store %arg9[%c0_45, %c325], %43 {strides = array<i32>} : memref<64x326xbf16, #tpu.memory_space<vmem>>, vector<64x1xbf16>,
    %c1_i32 = arith.constant 1 : i32
    %c0_i32 = arith.constant 0 : i32
    %46 = arith.cmpi eq, %c1_i32, %c0_i32 : i32
    %c1_i32_46 = arith.constant 1 : i32
    %47 = arith.select %46, %c1_i32_46, %c1_i32 : i32
    %48 = arith.remsi %arg0, %47 : i32
    %c0_i32_47 = arith.constant 0 : i32
    %49 = arith.cmpi ne, %48, %c0_i32_47 : i32
    %c0_i32_48 = arith.constant 0 : i32
    %50 = arith.cmpi slt, %48, %c0_i32_48 : i32
    %c0_i32_49 = arith.constant 0 : i32
    %51 = arith.cmpi slt, %47, %c0_i32_49 : i32
    %52 = arith.xori %50, %51 : i1
    %53 = arith.andi %52, %49 : i1
    %54 = arith.addi %48, %47 : i32
    %55 = arith.select %53, %54, %48 : i32
    %c0_i32_50 = arith.constant 0 : i32
    %56 = arith.cmpi eq, %55, %c0_i32_50 : i32
    %57 = arith.extui %56 : i1 to i32
    %c0_i32_51 = arith.constant 0 : i32
    %58 = arith.cmpi ne, %57, %c0_i32_51 : i32
    scf.if %58 {
      %cst_63 = arith.constant 0.000000e+00 : bf16
      %88 = vector.broadcast %cst_63 : bf16 to vector<64x18xbf16>
      %c0_64 = arith.constant 0 : index
      %c1_65 = arith.constant 1 : index
      %89 = vector.load %arg9[%c0_64, %c1_65] : memref<64x326xbf16, #tpu.memory_space<vmem>>, vector<64x18xbf16>
      tpu.vector_store %arg9[%c0_64, %c1_65], %88 {strides = array<i32>} : memref<64x326xbf16, #tpu.memory_space<vmem>>, vector<64x18xbf16>,
    } else {
    }
    %c0_i32_52 = arith.constant 0 : i32
    %59 = arith.cmpi eq, %55, %c0_i32_52 : i32
    %60 = arith.extui %59 : i1 to i32
    %c0_i32_53 = arith.constant 0 : i32
    %61 = arith.cmpi ne, %60, %c0_i32_53 : i32
    scf.if %61 {
      %cst_63 = arith.constant 0.000000e+00 : bf16
      %88 = vector.broadcast %cst_63 : bf16 to vector<64x18xbf16>
      %c0_64 = arith.constant 0 : index
      %c307 = arith.constant 307 : index
      %89 = vector.load %arg9[%c0_64, %c307] : memref<64x326xbf16, #tpu.memory_space<vmem>>, vector<64x18xbf16>
      tpu.vector_store %arg9[%c0_64, %c307], %88 {strides = array<i32>} : memref<64x326xbf16, #tpu.memory_space<vmem>>, vector<64x18xbf16>,
    } else {
    }
    %c0_54 = arith.constant 0 : index
    %c0_55 = arith.constant 0 : index
    %62 = vector.load %arg4[%c0_54, %c0_55] : memref<9x64xbf16, #tpu.memory_space<vmem>>, vector<9x64xbf16>
    %c0_56 = arith.constant 0 : index
    %c0_57 = arith.constant 0 : index
    %63 = vector.load %arg9[%c0_56, %c0_57] : memref<64x326xbf16, #tpu.memory_space<vmem>>, vector<64x326xbf16>
    %cst_58 = arith.constant dense<0.000000e+00> : vector<9x326xf32>
    %64 = tpu.matmul %62, %63, %cst_58 {dimension_numbers = #tpu.dot_dimension_numbers<[1], [0], [0], [1], [0, 0, 1, 1], [], []>} : vector<9x64xbf16>, vector<64x326xbf16>, vector<9x326xf32> -> vector<9x326xf32>
    %65 = vector.extract_strided_slice %64 {offsets = [0, 0], sizes = [1, 288], strides = [1, 1]} : vector<9x326xf32> to vector<1x288xf32>
    %66 = vector.extract_strided_slice %64 {offsets = [1, 1], sizes = [1, 288], strides = [1, 1]} : vector<9x326xf32> to vector<1x288xf32>
    %67 = arith.addf %65, %66 : vector<1x288xf32>
    %68 = vector.extract_strided_slice %64 {offsets = [2, 2], sizes = [1, 288], strides = [1, 1]} : vector<9x326xf32> to vector<1x288xf32>
    %69 = arith.addf %67, %68 : vector<1x288xf32>
    %70 = vector.extract_strided_slice %64 {offsets = [3, 18], sizes = [1, 288], strides = [1, 1]} : vector<9x326xf32> to vector<1x288xf32>
    %71 = arith.addf %69, %70 : vector<1x288xf32>
    %72 = vector.extract_strided_slice %64 {offsets = [4, 19], sizes = [1, 288], strides = [1, 1]} : vector<9x326xf32> to vector<1x288xf32>
    %73 = arith.addf %71, %72 : vector<1x288xf32>
    %74 = vector.extract_strided_slice %64 {offsets = [5, 20], sizes = [1, 288], strides = [1, 1]} : vector<9x326xf32> to vector<1x288xf32>
    %75 = arith.addf %73, %74 : vector<1x288xf32>
    %76 = vector.extract_strided_slice %64 {offsets = [6, 36], sizes = [1, 288], strides = [1, 1]} : vector<9x326xf32> to vector<1x288xf32>
    %77 = arith.addf %75, %76 : vector<1x288xf32>
    %78 = vector.extract_strided_slice %64 {offsets = [7, 37], sizes = [1, 288], strides = [1, 1]} : vector<9x326xf32> to vector<1x288xf32>
    %79 = arith.addf %77, %78 : vector<1x288xf32>
    %80 = vector.extract_strided_slice %64 {offsets = [8, 38], sizes = [1, 288], strides = [1, 1]} : vector<9x326xf32> to vector<1x288xf32>
    %81 = arith.addf %79, %80 : vector<1x288xf32>
    %c0_59 = arith.constant 0 : index
    %82 = memref.load %arg6[%c0_59] : memref<1xf32, #tpu.memory_space<smem>>
    %83 = vector.broadcast %82 : f32 to vector<1x288xf32>
    %84 = arith.addf %81, %83 : vector<1x288xf32>
    %c0_60 = arith.constant 0 : index
    %c0_61 = arith.constant 0 : index
    %c0_62 = arith.constant 0 : index
    %85 = vector.load %arg7[%c0_60, %c0_61, %c0_62] : memref<1x1x288xf32, #tpu.memory_space<vmem>>, vector<1x1x288xf32>
    %86 = vector.shape_cast %85 : vector<1x1x288xf32> to vector<1x288xf32>
    %87 = vector.shape_cast %84 : vector<1x288xf32> to vector<1x1x288xf32>
    tpu.vector_store %arg7[%c0_60, %c0_61, %c0_62], %87 {strides = array<i32>} : memref<1x1x288xf32, #tpu.memory_space<vmem>>, vector<1x1x288xf32>,
    return
  }
  func.func @transform_0(%arg0: i32) -> (i32, i32, i32) {
    %c0_i32 = arith.constant 0 : i32
    %c0_i32_0 = arith.constant 0 : i32
    %c0_i32_1 = arith.constant 0 : i32
    return %arg0, %c0_i32, %c0_i32_0 : i32, i32, i32
  }
  func.func @transform_1(%arg0: i32) -> (i32, i32) {
    %c0_i32 = arith.constant 0 : i32
    %c0_i32_0 = arith.constant 0 : i32
    %c0_i32_1 = arith.constant 0 : i32
    return %c0_i32, %c0_i32_0 : i32, i32
  }
  func.func @transform_2(%arg0: i32) -> (i32, i32) {
    %c0_i32 = arith.constant 0 : i32
    %c0_i32_0 = arith.constant 0 : i32
    %c0_i32_1 = arith.constant 0 : i32
    return %c0_i32, %c0_i32_0 : i32, i32
  }
  func.func @transform_3(%arg0: i32) -> (i32, i32) {
    %c0_i32 = arith.constant 0 : i32
    %c0_i32_0 = arith.constant 0 : i32
    %c0_i32_1 = arith.constant 0 : i32
    return %c0_i32, %c0_i32_0 : i32, i32
  }
  func.func @transform_4(%arg0: i32) -> (i32, i32) {
    %c0_i32 = arith.constant 0 : i32
    %c0_i32_0 = arith.constant 0 : i32
    %c0_i32_1 = arith.constant 0 : i32
    return %c0_i32, %c0_i32_0 : i32, i32
  }
  func.func @transform_5(%arg0: i32) -> i32 {
    %c0_i32 = arith.constant 0 : i32
    %c0_i32_0 = arith.constant 0 : i32
    return %c0_i32 : i32
  }
  func.func @transform_6(%arg0: i32) -> (i32, i32, i32) {
    %c0_i32 = arith.constant 0 : i32
    %c0_i32_0 = arith.constant 0 : i32
    %c0_i32_1 = arith.constant 0 : i32
    return %arg0, %c0_i32, %c0_i32_0 : i32, i32, i32
  }
}

</mosaic_0001>

<llo_original>
// kernel: dncnn_forward.1
$region0: #{dncnn_forward.1}
  #allocation0 [shape = 'u32[]', space=smem, size = 0x4, offset = 0x4, fixed_abs, tag = 'smem constant byte address 0x4 - core index']
  #allocation1 [shape = 'u32[144,128]{1,0:T(1,128)}', space=vmem, size = 0x12000, scoped, tag = 'internal scratch']
  #allocation2 [shape = 'f32[9,324]{1,0:T(8,128)}', space=vmem, size = 0x6000, scoped, tag = 'scratch operand']
  #allocation3 [shape = 'bf16[64,326]{1,0:T(16,128)(2,1)}', space=vmem, size = 0xc000, scoped, tag = 'scratch operand']
  #allocation4 [shape = 'f32[1]{0:T(128)S(6)}', space=smem, size = 0x200, scoped, tag = 'scoped memory for dncnn_forward.1']
  %s0 = inlined_call_operand.vmem [shape: f32[2,1,362], index: 0, kind: input, shape index: {}]
  %s1 = inlined_call_operand.vmem [shape: f32[64,9], index: 1, kind: input, shape index: {}]
  %s2 = inlined_call_operand.vmem [shape: f32[64,1], index: 2, kind: input, shape index: {}]
  %s3 = inlined_call_operand.vmem [shape: bf16[9,64], index: 3, kind: input, shape index: {}]
  %s4 = inlined_call_operand.vmem [shape: f32[1,324], index: 4, kind: input, shape index: {}]
  %s5 = inlined_call_operand.<no memory space> [shape: f32[1], index: 5, kind: input, shape index: {}]
  %s6 = inlined_call_operand.vmem [shape: f32[2,1,288], index: 6, kind: output, shape index: {}]
  %s7 = sld [smem:[#allocation0]]
  $region57: #{dncnn_forward.1} parent=0
    _
  %s9 = ssub.s32 1, %s7
  %s10 = scalar_select 0, %s9, %s7
  %11 = sst [smem:[#allocation4]] %s5
  loop: start=0, step=1, limit=4
  $region2: #{dncnn_forward.1} parent=0 // loop_pre_header
    _
  $region3: #{dncnn_forward.1} parent=0 // loop_header
    %s13 = sphi 0, %s17
    %p14 = scmp.ge.s32.totalorder %s13, 4
    %s23 = sphi 0, %s25
    %s26 = sphi 0, %s23
    %s27 = sphi 0, %s26
    %s43 = sphi 0, %s27
    %s47 = sphi 0, %s47
    %s49 = sphi 0, %s47
    %s50 = sphi 0, %s49
    %s64 = sphi 0, %s50
    %s68 = sphi 0, %s68
    %s70 = sphi 0, %s68
    %s71 = sphi 0, %s70
    %s85 = sphi 0, %s71
    %s89 = sphi 0, %s89
    %s91 = sphi 0, %s89
    %s92 = sphi 0, %s91
    %s106 = sphi 0, %s92
    %s110 = sphi 0, %s110
    %s112 = sphi 0, %s110
    %s113 = sphi 0, %s112
    %s127 = sphi 0, %s113
    %s131 = sphi 0, %s131
    %s133 = sphi 0, %s131
    %s134 = sphi 0, %s133
    %s148 = sphi 0, %s134
    %s154 = sphi 0, %s156
    %s157 = sphi 0, %s154
    %s158 = sphi 0, %s157
    %s174 = sphi 0, %s158
  $region4: #{dncnn_forward.1} parent=0 // loop_header_branch
    %16 = sbr.rel (%p14) target = $region8
  $region5: #{dncnn_forward.1} parent=0 // loop_body
    %s18 = ssub.s32 %s13, 1
    %s19 = ssub.s32 %s13, 2
    %s20 = sadd.s32 %s13, 1
    %s21 = ssub.s32 %s13, %s20
    %p22 = scmp.eq.s32.totalorder %s21, 0
    %s24 = sadd.s32 %s23, 1
    %s25 = scalar_select %p22, %s23, %s24
    %p28 = pneg %p22
    %p29 = scmp.eq.s32.totalorder %s13, 1
    %p30 = por %p28, %p29
    %p31 = scmp.ne.s32.totalorder %s23, %s26
    %p32 = scmp.eq.s32.totalorder %s13, 0
    %p33 = por %p31, %p32
    %p34 = scmp.ne.s32.totalorder %s23, %s26
    %p35 = scmp.eq.s32.totalorder %s18, 1
    %p36 = por %p34, %p35
    %p37 = scmp.ne.s32.totalorder %s26, %s27
    %p38 = scmp.eq.s32.totalorder %s18, 0
    %p39 = por %p37, %p38
    %p40 = scmp.ne.s32.totalorder %s26, %s27
    %p41 = scmp.eq.s32.totalorder %s19, 1
    %p42 = por %p40, %p41
    %p44 = scmp.ne.s32.totalorder %s27, %s43
    %p45 = scmp.eq.s32.totalorder %s19, 0
    %p46 = por %p44, %p45
    %s48 = sadd.s32 %s47, 1
    %p51 = scmp.eq.s32.totalorder %s13, 1
    %p52 = scmp.ne.s32.totalorder %s47, %s49
    %p53 = scmp.eq.s32.totalorder %s13, 0
    %p54 = por %p52, %p53
    %p55 = scmp.ne.s32.totalorder %s47, %s49
    %p56 = scmp.eq.s32.totalorder %s18, 1
    %p57 = por %p55, %p56
    %p58 = scmp.ne.s32.totalorder %s49, %s50
    %p59 = scmp.eq.s32.totalorder %s18, 0
    %p60 = por %p58, %p59
    %p61 = scmp.ne.s32.totalorder %s49, %s50
    %p62 = scmp.eq.s32.totalorder %s19, 1
    %p63 = por %p61, %p62
    %p65 = scmp.ne.s32.totalorder %s50, %s64
    %p66 = scmp.eq.s32.totalorder %s19, 0
    %p67 = por %p65, %p66
    %s69 = sadd.s32 %s68, 1
    %p72 = scmp.eq.s32.totalorder %s13, 1
    %p73 = scmp.ne.s32.totalorder %s68, %s70
    %p74 = scmp.eq.s32.totalorder %s13, 0
    %p75 = por %p73, %p74
    %p76 = scmp.ne.s32.totalorder %s68, %s70
    %p77 = scmp.eq.s32.totalorder %s18, 1
    %p78 = por %p76, %p77
    %p79 = scmp.ne.s32.totalorder %s70, %s71
    %p80 = scmp.eq.s32.totalorder %s18, 0
    %p81 = por %p79, %p80
    %p82 = scmp.ne.s32.totalorder %s70, %s71
    %p83 = scmp.eq.s32.totalorder %s19, 1
    %p84 = por %p82, %p83
    %p86 = scmp.ne.s32.totalorder %s71, %s85
    %p87 = scmp.eq.s32.totalorder %s19, 0
    %p88 = por %p86, %p87
    %s90 = sadd.s32 %s89, 1
    %p93 = scmp.eq.s32.totalorder %s13, 1
    %p94 = scmp.ne.s32.totalorder %s89, %s91
    %p95 = scmp.eq.s32.totalorder %s13, 0
    %p96 = por %p94, %p95
    %p97 = scmp.ne.s32.totalorder %s89, %s91
    %p98 = scmp.eq.s32.totalorder %s18, 1
    %p99 = por %p97, %p98
    %p100 = scmp.ne.s32.totalorder %s91, %s92
    %p101 = scmp.eq.s32.totalorder %s18, 0
    %p102 = por %p100, %p101
    %p103 = scmp.ne.s32.totalorder %s91, %s92
    %p104 = scmp.eq.s32.totalorder %s19, 1
    %p105 = por %p103, %p104
    %p107 = scmp.ne.s32.totalorder %s92, %s106
    %p108 = scmp.eq.s32.totalorder %s19, 0
    %p109 = por %p107, %p108
    %s111 = sadd.s32 %s110, 1
    %p114 = scmp.eq.s32.totalorder %s13, 1
    %p115 = scmp.ne.s32.totalorder %s110, %s112
    %p116 = scmp.eq.s32.totalorder %s13, 0
    %p117 = por %p115, %p116
    %p118 = scmp.ne.s32.totalorder %s110, %s112
    %p119 = scmp.eq.s32.totalorder %s18, 1
    %p120 = por %p118, %p119
    %p121 = scmp.ne.s32.totalorder %s112, %s113
    %p122 = scmp.eq.s32.totalorder %s18, 0
    %p123 = por %p121, %p122
    %p124 = scmp.ne.s32.totalorder %s112, %s113
    %p125 = scmp.eq.s32.totalorder %s19, 1
    %p126 = por %p124, %p125
    %p128 = scmp.ne.s32.totalorder %s113, %s127
    %p129 = scmp.eq.s32.totalorder %s19, 0
    %p130 = por %p128, %p129
    %s132 = sadd.s32 %s131, 1
    %p135 = scmp.eq.s32.totalorder %s13, 1
    %p136 = scmp.ne.s32.totalorder %s131, %s133
    %p137 = scmp.eq.s32.totalorder %s13, 0
    %p138 = por %p136, %p137
    %p139 = scmp.ne.s32.totalorder %s131, %s133
    %p140 = scmp.eq.s32.totalorder %s18, 1
    %p141 = por %p139, %p140
    %p142 = scmp.ne.s32.totalorder %s133, %s134
    %p143 = scmp.eq.s32.totalorder %s18, 0
    %p144 = por %p142, %p143
    %p145 = scmp.ne.s32.totalorder %s133, %s134
    %p146 = scmp.eq.s32.totalorder %s19, 1
    %p147 = por %p145, %p146
    %p149 = scmp.ne.s32.totalorder %s134, %s148
    %p150 = scmp.eq.s32.totalorder %s19, 0
    %p151 = por %p149, %p150
    %s152 = ssub.s32 %s13, %s20
    %p153 = scmp.eq.s32.totalorder %s152, 0
    %s155 = sadd.s32 %s154, 1
    %s156 = scalar_select %p153, %s154, %s155
    %p159 = pneg %p153
    %p160 = scmp.eq.s32.totalorder %s13, 1
    %p161 = por %p159, %p160
    %p162 = scmp.ne.s32.totalorder %s154, %s157
    %p163 = scmp.eq.s32.totalorder %s13, 0
    %p164 = por %p162, %p163
    %p165 = scmp.ne.s32.totalorder %s154, %s157
    %p166 = scmp.eq.s32.totalorder %s18, 1
    %p167 = por %p165, %p166
    %p168 = scmp.ne.s32.totalorder %s157, %s158
    %p169 = scmp.eq.s32.totalorder %s18, 0
    %p170 = por %p168, %p169
    %p171 = scmp.ne.s32.totalorder %s157, %s158
    %p172 = scmp.eq.s32.totalorder %s19, 1
    %p173 = por %p171, %p172
    %p175 = scmp.ne.s32.totalorder %s158, %s174
    %p176 = scmp.eq.s32.totalorder %s19, 0
    %p177 = por %p175, %p176
    %p178 = scmp.le.s32.totalorder 1, %s13
    %p179 = scmp.lt.s32.totalorder %s13, 3
    %p180 = pnand %p178, %p179
    %p181 = pneg %p180
    // Predicated region
    $region9: #{dncnn_forward.1} parent=5 // pred_check
      _
    $region10: #{dncnn_forward.1} parent=5 // pred_check_branch
      %183 = sbr.rel (%p180) target = $region12
    $region11: #{dncnn_forward.1} parent=5 // pred_region
      %s184 = ssub.s32 %s13, 1
      // Predicated region
      $region13: #{dncnn_forward.1} parent=11 // pred_check
        %p185 = pneg %p60
      $region14: #{dncnn_forward.1} parent=11 // pred_check_branch
        %187 = sbr.rel (%p185) target = $region16
      $region15: #{dncnn_forward.1} parent=11 // pred_region
        _
      $region16: #{dncnn_forward.1} parent=11 // pred_fallthru
        _
      // Predicated region
      $region17: #{dncnn_forward.1} parent=11 // pred_check
        %p188 = pneg %p81
      $region18: #{dncnn_forward.1} parent=11 // pred_check_branch
        %190 = sbr.rel (%p188) target = $region20
      $region19: #{dncnn_forward.1} parent=11 // pred_region
        _
      $region20: #{dncnn_forward.1} parent=11 // pred_fallthru
        _
      // Predicated region
      $region21: #{dncnn_forward.1} parent=11 // pred_check
        %p191 = pneg %p102
      $region22: #{dncnn_forward.1} parent=11 // pred_check_branch
        %193 = sbr.rel (%p191) target = $region24
      $region23: #{dncnn_forward.1} parent=11 // pred_region
        _
      $region24: #{dncnn_forward.1} parent=11 // pred_fallthru
        _
      // Predicated region
      $region25: #{dncnn_forward.1} parent=11 // pred_check
        %p194 = pneg %p123
      $region26: #{dncnn_forward.1} parent=11 // pred_check_branch
        %196 = sbr.rel (%p194) target = $region28
      $region27: #{dncnn_forward.1} parent=11 // pred_region
        _
      $region28: #{dncnn_forward.1} parent=11 // pred_fallthru
        _
      // Predicated region
      $region29: #{dncnn_forward.1} parent=11 // pred_check
        %p197 = pneg %p144
      $region30: #{dncnn_forward.1} parent=11 // pred_check_branch
        %199 = sbr.rel (%p197) target = $region32
      $region31: #{dncnn_forward.1} parent=11 // pred_region
        _
      $region32: #{dncnn_forward.1} parent=11 // pred_fallthru
        _
    $region12: #{dncnn_forward.1} parent=5 // pred_fallthru
      _
    %p200 = scmp.lt.s32.totalorder %s13, 2
    // Predicated region
    $region33: #{dncnn_forward.1} parent=5 // pred_check
      %p201 = pneg %p200
    $region34: #{dncnn_forward.1} parent=5 // pred_check_branch
      %203 = sbr.rel (%p201) target = $region36
    $region35: #{dncnn_forward.1} parent=5 // pred_region
      // Predicated region
      $region37: #{dncnn_forward.1} parent=35 // pred_check
        %p204 = pneg %p33
      $region38: #{dncnn_forward.1} parent=35 // pred_check_branch
        %206 = sbr.rel (%p204) target = $region40
      $region39: #{dncnn_forward.1} parent=35 // pred_region
        %p207 = scmp.lt.s32.totalorder %s13, 1
        %s208 = scalar_select %p207, %s13, 1
        %s209 = smul.addr %s208, 3
        %s210 = scalar_lea.vmem %s0, %s209
      $region40: #{dncnn_forward.1} parent=35 // pred_fallthru
        _
    $region36: #{dncnn_forward.1} parent=5 // pred_fallthru
      _
    %p211 = scmp.le.s32.totalorder 1, %s13
    %p212 = scmp.lt.s32.totalorder %s13, 3
    %p213 = pnand %p211, %p212
    %p214 = pneg %p213
    // Predicated region
    $region41: #{dncnn_forward.1} parent=5 // pred_check
      _
    $region42: #{dncnn_forward.1} parent=5 // pred_check_branch
      %216 = sbr.rel (%p213) target = $region44
    $region43: #{dncnn_forward.1} parent=5 // pred_region
      %s217 = ssub.s32 %s13, 1
      %p218 = scmp.lt.s32.totalorder %s18, 1
      %s219 = scalar_select %p218, %s18, 1
      %s220 = smul.addr %s219, 3
      %s221 = scalar_lea.vmem %s0, %s220
      %p222 = pneg %p39
      %p223 = pneg %p36
      %p224 = pneg %p60
      %p225 = pneg %p57
      %p226 = pneg %p81
      %p227 = pneg %p78
      %p228 = pneg %p102
      %p229 = pneg %p99
      %p230 = pneg %p123
      %p231 = pneg %p120
      %p232 = pneg %p144
      %p233 = pneg %p141
      %p234 = pneg %p170
      %p235 = pneg %p167
      %p236 = scmp.lt.s32.totalorder %s18, 1
      %s237 = scalar_select %p236, %s18, 1
      %s238 = smul.addr %s237, 3
      %s239 = scalar_lea.vmem %s6, %s238
      %p240 = scmp.lt.s32.totalorder %s18, 1
      %s241 = scalar_select %p240, %s18, 1
      %s242 = smul.addr %s241, 3
      %s243 = scalar_lea.vmem %s0, %s242
      %p244 = scmp.lt.s32.totalorder %s18, 1
      %s245 = scalar_select %p244, %s18, 1
      %s246 = smul.addr %s245, 3
      %s247 = scalar_lea.vmem %s6, %s246
      %v249 = vld [vmem:[%s243] sm:$0x7]
      %v250 = vlaneseq
      %vm251 = vcmp.ge.s32.totalorder %v250, 0
      %vm252 = vcmp.lt.s32.totalorder %v250, 324
      %vm253 = vmand %vm251, %vm252
      %254 = vst.msk [vmem:[#allocation2] ss:$8 sm:$0x7] %vm253, %v249
      %255 = vst.msk [vmem:[#allocation2] ss:$8 sm:$0x0] %vm253, %v249
      %v256 = vld [vmem:[%s243] sm:$0x7]
      %258 = vrot.lane.b32.xlu0 %v256, 127
      %v259 = vpop.permute.xlu0 %258
      %v260 = vrot.slane %v259, 1
      %vm261 = vcmask 1039360
      %v262 = vsel %vm261, %v259, %v260
      %s264 = scalar_lea.vmem [#allocation2], 1
      %265 = vst.msk [vmem:[%s264] ss:$8 sm:$0x7] %vm253, %v262
      %266 = vst.msk [vmem:[%s264] ss:$8 sm:$0x0] %vm253, %v262
      %v267 = vld [vmem:[%s243] sm:$0x7]
      %269 = vrot.lane.b32.xlu0 %v267, 126
      %v270 = vpop.permute.xlu0 %269
      %v271 = vrot.slane %v270, 1
      %vm272 = vcmask 1031168
      %v273 = vsel %vm272, %v270, %v271
      %s275 = scalar_lea.vmem [#allocation2], 2
      %276 = vst.msk [vmem:[%s275] ss:$8 sm:$0x7] %vm253, %v273
      %277 = vst.msk [vmem:[%s275] ss:$8 sm:$0x0] %vm253, %v273
      %v278 = vld [vmem:[%s243] sm:$0x7]
      %280 = vrot.lane.b32.xlu0 %v278, 110
      %v281 = vpop.permute.xlu0 %280
      %v282 = vrot.slane %v281, 1
      %vm283 = vcmask 900096
      %v284 = vsel %vm283, %v281, %v282
      %s286 = scalar_lea.vmem [#allocation2], 3
      %287 = vst.msk [vmem:[%s286] ss:$8 sm:$0x7] %vm253, %v284
      %288 = vst.msk [vmem:[%s286] ss:$8 sm:$0x0] %vm253, %v284
      %v289 = vld [vmem:[%s243] sm:$0x7]
      %291 = vrot.lane.b32.xlu0 %v289, 109
      %v292 = vpop.permute.xlu0 %291
      %v293 = vrot.slane %v292, 1
      %vm294 = vcmask 891904
      %v295 = vsel %vm294, %v292, %v293
      %s297 = scalar_lea.vmem [#allocation2], 4
      %298 = vst.msk [vmem:[%s297] ss:$8 sm:$0x7] %vm253, %v295
      %299 = vst.msk [vmem:[%s297] ss:$8 sm:$0x0] %vm253, %v295
      %v300 = vld [vmem:[%s243] sm:$0x7]
      %302 = vrot.lane.b32.xlu0 %v300, 108
      %v303 = vpop.permute.xlu0 %302
      %v304 = vrot.slane %v303, 1
      %vm305 = vcmask 883712
      %v306 = vsel %vm305, %v303, %v304
      %s308 = scalar_lea.vmem [#allocation2], 5
      %309 = vst.msk [vmem:[%s308] ss:$8 sm:$0x7] %vm253, %v306
      %310 = vst.msk [vmem:[%s308] ss:$8 sm:$0x0] %vm253, %v306
      %v311 = vld [vmem:[%s243] sm:$0x7]
      %313 = vrot.lane.b32.xlu0 %v311, 92
      %v314 = vpop.permute.xlu0 %313
      %v315 = vrot.slane %v314, 1
      %vm316 = vcmask 752640
      %v317 = vsel %vm316, %v314, %v315
      %s319 = scalar_lea.vmem [#allocation2], 6
      %320 = vst.msk [vmem:[%s319] ss:$8 sm:$0x7] %vm253, %v317
      %321 = vst.msk [vmem:[%s319] ss:$8 sm:$0x0] %vm253, %v317
      %v322 = vld [vmem:[%s243] sm:$0x7]
      %324 = vrot.lane.b32.xlu0 %v322, 91
      %v325 = vpop.permute.xlu0 %324
      %v326 = vrot.slane %v325, 1
      %vm327 = vcmask 744448
      %v328 = vsel %vm327, %v325, %v326
      %s330 = scalar_lea.vmem [#allocation2], 7
      %331 = vst.msk [vmem:[%s330] ss:$8 sm:$0x7] %vm253, %v328
      %332 = vst.msk [vmem:[%s330] ss:$8 sm:$0x0] %vm253, %v328
      %v333 = vld [vmem:[%s243] sm:$0x7]
      %335 = vrot.lane.b32.xlu0 %v333, 90
      %v336 = vpop.permute.xlu0 %335
      %v337 = vrot.slane %v336, 1
      %vm338 = vcmask 736256
      %v339 = vsel %vm338, %v336, %v337
      %s341 = scalar_lea.vmem [#allocation2], 24
      %342 = vst.msk [vmem:[%s341] ss:$8 sm:$0x7] %vm253, %v339
      %343 = vst.msk [vmem:[%s341] ss:$8 sm:$0x0] %vm253, %v339
      %v344 = vld [vmem:[%s1] sm:$0xff]
      %v345 = vld [vmem:[%s1 + $0x8] sm:$0xff]
      %v346 = vld [vmem:[%s1 + $0x10] sm:$0xff]
      %v347 = vld [vmem:[%s1 + $0x18] sm:$0xff]
      %v348 = vld [vmem:[%s1 + $0x20] sm:$0xff]
      %v349 = vld [vmem:[%s1 + $0x28] sm:$0xff]
      %v350 = vld [vmem:[%s1 + $0x30] sm:$0xff]
      %v351 = vld [vmem:[%s1 + $0x38] sm:$0xff]
      %v352 = vld [vmem:[#allocation2] sm:$0xff]
      %v353 = vld [vmem:[#allocation2 + $0x8] sm:$0xff]
      %v354 = vld [vmem:[#allocation2 + $0x10] sm:$0xff]
      %v355 = vld [vmem:[#allocation2 + $0x18] sm:$0x1]
      %v356 = vld [vmem:[#allocation2 + $0x20] sm:$0x1]
      %v357 = vld [vmem:[#allocation2 + $0x28] sm:$0x1]
      %v358 = vld [vmem:[%s2] sm:$0xff]
      %v359 = vld [vmem:[%s2 + $0x8] sm:$0xff]
      %v360 = vld [vmem:[%s2 + $0x10] sm:$0xff]
      %v361 = vld [vmem:[%s2 + $0x18] sm:$0xff]
      %v362 = vld [vmem:[%s2 + $0x20] sm:$0xff]
      %v363 = vld [vmem:[%s2 + $0x28] sm:$0xff]
      %v364 = vld [vmem:[%s2 + $0x30] sm:$0xff]
      %v365 = vld [vmem:[%s2 + $0x38] sm:$0xff]
      %367 = vset.pattern.permute.xlu0 0
      %368 = vperm.xlu0 %367, %v358
      %v369 = vpop.permute.xlu0 %368
      %372 = vset.pattern.permute.xlu0 0
      %373 = vperm.xlu0 %372, %v359
      %v374 = vpop.permute.xlu0 %373
      %377 = vset.pattern.permute.xlu0 0
      %378 = vperm.xlu0 %377, %v360
      %v379 = vpop.permute.xlu0 %378
      %382 = vset.pattern.permute.xlu0 0
      %383 = vperm.xlu0 %382, %v361
      %v384 = vpop.permute.xlu0 %383
      %387 = vset.pattern.permute.xlu0 0
      %388 = vperm.xlu0 %387, %v362
      %v389 = vpop.permute.xlu0 %388
      %392 = vset.pattern.permute.xlu0 0
      %393 = vperm.xlu0 %392, %v363
      %v394 = vpop.permute.xlu0 %393
      %397 = vset.pattern.permute.xlu0 0
      %398 = vperm.xlu0 %397, %v364
      %v399 = vpop.permute.xlu0 %398
      %402 = vset.pattern.permute.xlu0 0
      %403 = vperm.xlu0 %402, %v365
      %v404 = vpop.permute.xlu0 %403
      %vm406 = vcmask 72704
      %v408 = vsel %vm406, %v344, 0
      %v411 = vsel %vm406, %v345, 0
      %v414 = vsel %vm406, %v346, 0
      %v417 = vsel %vm406, %v347, 0
      %v420 = vsel %vm406, %v348, 0
      %v423 = vsel %vm406, %v349, 0
      %v426 = vsel %vm406, %v350, 0
      %v429 = vsel %vm406, %v351, 0
      %vm431 = vcmask 1040384
      %v433 = vsel %vm431, %v355, 0
      %v436 = vsel %vm431, %v356, 0
      %v439 = vsel %vm431, %v357, 0
      %441 = vmatprep.subr.mxu0 %v353
      %442 = vmatpush1.msra.mxu0 %v352
      %443 = vmatprep.subr.mxu0 %v436
      %444 = vmatpush1.msra.mxu0 %v433
      %445 = vmatprep.subr.mxu0 0.0
      %446 = vmatpush1.msra.mxu0 0.0
      %447 = vmatprep.subr.mxu0 0.0
      %448 = vmatpush1.msra.mxu0 0.0
      %449 = vmatprep.subr.mxu0 0.0
      %450 = vmatpush1.msra.mxu0 0.0
      %451 = vmatprep.subr.mxu0 0.0
      %452 = vmatpush1.msra.mxu0 0.0
      %453 = vmatprep.subr.mxu0 0.0
      %454 = vmatpush1.msra.mxu0 0.0
      %455 = vmatprep.subr.mxu0 0.0
      %456 = vmatpush1.msra.mxu0 0.0
      %457 = vmatprep.subr.mxu0 0.0
      %458 = vmatpush1.msra.mxu0 0.0
      %459 = vmatprep.subr.mxu0 0.0
      %460 = vmatpush1.msra.mxu0 0.0
      %461 = vmatprep.subr.mxu0 0.0
      %462 = vmatpush1.msra.mxu0 0.0
      %463 = vmatprep.subr.mxu0 0.0
      %464 = vmatpush1.msra.mxu0 0.0
      %465 = vmatprep.subr.mxu0 0.0
      %466 = vmatpush1.msra.mxu0 0.0
      %467 = vmatprep.subr.mxu0 0.0
      %468 = vmatpush1.msra.mxu0 0.0
      %469 = vmatprep.subr.mxu0 0.0
      %470 = vmatpush1.msra.mxu0 0.0
      %471 = vmatprep.subr.mxu0 0.0
      %472 = vmatpush1.msra.mxu0 0.0
      %473 = vmatprep.subr.mxu0 0.0
      %474 = vmatpush1.msra.mxu0 0.0
      %475 = vmatprep.subr.mxu0 0.0
      %476 = vmatpush1.msra.mxu0 0.0
      %477 = vmatprep.subr.mxu0 0.0
      %478 = vmatpush1.msra.mxu0 0.0
      %479 = vmatprep.subr.mxu0 0.0
      %480 = vmatpush1.msra.mxu0 0.0
      %481 = vmatprep.subr.mxu0 0.0
      %482 = vmatpush1.msra.mxu0 0.0
      %483 = vmatprep.subr.mxu0 0.0
      %484 = vmatpush1.msra.mxu0 0.0
      %485 = vmatprep.subr.mxu0 0.0
      %486 = vmatpush1.msra.mxu0 0.0
      %487 = vmatprep.subr.mxu0 0.0
      %488 = vmatpush1.msra.mxu0 0.0
      %489 = vmatprep.subr.mxu0 0.0
      %490 = vmatpush1.msra.mxu0 0.0
      %491 = vmatprep.subr.mxu0 0.0
      %492 = vmatpush1.msra.mxu0 0.0
      %493 = vmatprep.subr.mxu0 0.0
      %494 = vmatpush1.msra.mxu0 0.0
      %495 = vmatprep.subr.mxu0 0.0
      %496 = vmatpush1.msra.mxu0 0.0
      %497 = vmatprep.subr.mxu0 0.0
      %498 = vmatpush1.msra.mxu0 0.0
      %499 = vmatprep.subr.mxu0 0.0
      %500 = vmatpush1.msra.mxu0 0.0
      %501 = vmatprep.subr.mxu0 0.0
      %502 = vmatpush1.msra.mxu0 0.0
      %503 = vmatprep.subr.mxu0 0.0
      %504 = vmatpush1.msra.mxu0 0.0
      %505 = vmatprep.mubr.f32.mxu0 0.0
      %506 = vmatmul.mubr.f32.gmra.mrb[0].mxu0 %v408
      %v507 = vpop.f32.mrb[0].mxu0
      %v508 = vadd.f32 %v369, %v507
      %v509 = vpop.f32.mrb[0].mxu0
      %v510 = vadd.f32 %v369, %v509
      %511 = vmatprep.mubr.f32.mxu0 0.0
      %512 = vmatmul.mubr.f32.gmra.mrb[0].mxu0 %v411
      %v513 = vpop.f32.mrb[0].mxu0
      %v514 = vadd.f32 %v374, %v513
      %v515 = vpop.f32.mrb[0].mxu0
      %v516 = vadd.f32 %v374, %v515
      %517 = vmatprep.mubr.f32.mxu0 0.0
      %518 = vmatmul.mubr.f32.gmra.mrb[0].mxu0 %v414
      %v519 = vpop.f32.mrb[0].mxu0
      %v520 = vadd.f32 %v379, %v519
      %v521 = vpop.f32.mrb[0].mxu0
      %v522 = vadd.f32 %v379, %v521
      %523 = vmatprep.mubr.f32.mxu0 0.0
      %524 = vmatmul.mubr.f32.gmra.mrb[0].mxu0 %v417
      %v525 = vpop.f32.mrb[0].mxu0
      %v526 = vadd.f32 %v384, %v525
      %v527 = vpop.f32.mrb[0].mxu0
      %v528 = vadd.f32 %v384, %v527
      %529 = vmatprep.mubr.f32.mxu0 0.0
      %530 = vmatmul.mubr.f32.gmra.mrb[0].mxu0 %v420
      %v531 = vpop.f32.mrb[0].mxu0
      %v532 = vadd.f32 %v389, %v531
      %v533 = vpop.f32.mrb[0].mxu0
      %v534 = vadd.f32 %v389, %v533
      %535 = vmatprep.mubr.f32.mxu0 0.0
      %536 = vmatmul.mubr.f32.gmra.mrb[0].mxu0 %v423
      %v537 = vpop.f32.mrb[0].mxu0
      %v538 = vadd.f32 %v394, %v537
      %v539 = vpop.f32.mrb[0].mxu0
      %v540 = vadd.f32 %v394, %v539
      %541 = vmatprep.mubr.f32.mxu0 0.0
      %542 = vmatmul.mubr.f32.gmra.mrb[0].mxu0 %v426
      %v543 = vpop.f32.mrb[0].mxu0
      %v544 = vadd.f32 %v399, %v543
      %v545 = vpop.f32.mrb[0].mxu0
      %v546 = vadd.f32 %v399, %v545
      %547 = vmatprep.mubr.f32.mxu0 0.0
      %548 = vmatmul.mubr.f32.gmra.mrb[0].mxu0 %v429
      %v549 = vpop.f32.mrb[0].mxu0
      %v550 = vadd.f32 %v404, %v549
      %v551 = vpop.f32.mrb[0].mxu0
      %v552 = vadd.f32 %v404, %v551
      %553 = vdwg.mxu0
      %554 = vmatprep.subr.mxu0 0.0
      %555 = vmatpush1.msra.mxu0 %v354
      %556 = vmatprep.subr.mxu0 0.0
      %557 = vmatpush1.msra.mxu0 %v439
      %558 = vmatprep.subr.mxu0 0.0
      %559 = vmatpush1.msra.mxu0 0.0
      %560 = vmatprep.subr.mxu0 0.0
      %561 = vmatpush1.msra.mxu0 0.0
      %562 = vmatprep.subr.mxu0 0.0
      %563 = vmatpush1.msra.mxu0 0.0
      %564 = vmatprep.subr.mxu0 0.0
      %565 = vmatpush1.msra.mxu0 0.0
      %566 = vmatprep.subr.mxu0 0.0
      %567 = vmatpush1.msra.mxu0 0.0
      %568 = vmatprep.subr.mxu0 0.0
      %569 = vmatpush1.msra.mxu0 0.0
      %570 = vmatprep.subr.mxu0 0.0
      %571 = vmatpush1.msra.mxu0 0.0
      %572 = vmatprep.subr.mxu0 0.0
      %573 = vmatpush1.msra.mxu0 0.0
      %574 = vmatprep.subr.mxu0 0.0
      %575 = vmatpush1.msra.mxu0 0.0
      %576 = vmatprep.subr.mxu0 0.0
      %577 = vmatpush1.msra.mxu0 0.0
      %578 = vmatprep.subr.mxu0 0.0
      %579 = vmatpush1.msra.mxu0 0.0
      %580 = vmatprep.subr.mxu0 0.0
      %581 = vmatpush1.msra.mxu0 0.0
      %582 = vmatprep.subr.mxu0 0.0
      %583 = vmatpush1.msra.mxu0 0.0
      %584 = vmatprep.subr.mxu0 0.0
      %585 = vmatpush1.msra.mxu0 0.0
      %586 = vmatprep.subr.mxu0 0.0
      %587 = vmatpush1.msra.mxu0 0.0
      %588 = vmatprep.subr.mxu0 0.0
      %589 = vmatpush1.msra.mxu0 0.0
      %590 = vmatprep.subr.mxu0 0.0
      %591 = vmatpush1.msra.mxu0 0.0
      %592 = vmatprep.subr.mxu0 0.0
      %593 = vmatpush1.msra.mxu0 0.0
      %594 = vmatprep.subr.mxu0 0.0
      %595 = vmatpush1.msra.mxu0 0.0
      %596 = vmatprep.subr.mxu0 0.0
      %597 = vmatpush1.msra.mxu0 0.0
      %598 = vmatprep.subr.mxu0 0.0
      %599 = vmatpush1.msra.mxu0 0.0
      %600 = vmatprep.subr.mxu0 0.0
      %601 = vmatpush1.msra.mxu0 0.0
      %602 = vmatprep.subr.mxu0 0.0
      %603 = vmatpush1.msra.mxu0 0.0
      %604 = vmatprep.subr.mxu0 0.0
      %605 = vmatpush1.msra.mxu0 0.0
      %606 = vmatprep.subr.mxu0 0.0
      %607 = vmatpush1.msra.mxu0 0.0
      %608 = vmatprep.subr.mxu0 0.0
      %609 = vmatpush1.msra.mxu0 0.0
      %610 = vmatprep.subr.mxu0 0.0
      %611 = vmatpush1.msra.mxu0 0.0
      %612 = vmatprep.subr.mxu0 0.0
      %613 = vmatpush1.msra.mxu0 0.0
      %614 = vmatprep.subr.mxu0 0.0
      %615 = vmatpush1.msra.mxu0 0.0
      %616 = vmatprep.subr.mxu0 0.0
      %617 = vmatpush1.msra.mxu0 0.0
      %618 = vmatprep.mubr.f32.mxu0 0.0
      %619 = vmatmul.mubr.f32.gmra.mrb[0].mxu0 %v408
      %v620 = vpop.f32.mrb[0].mxu0
      %v621 = vadd.f32 %v369, %v620
      %v622 = vpop.f32.mrb[0].mxu0
      %623 = vmatprep.mubr.f32.mxu0 0.0
      %624 = vmatmul.mubr.f32.gmra.mrb[0].mxu0 %v411
      %v625 = vpop.f32.mrb[0].mxu0
      %v626 = vadd.f32 %v374, %v625
      %v627 = vpop.f32.mrb[0].mxu0
      %628 = vmatprep.mubr.f32.mxu0 0.0
      %629 = vmatmul.mubr.f32.gmra.mrb[0].mxu0 %v414
      %v630 = vpop.f32.mrb[0].mxu0
      %v631 = vadd.f32 %v379, %v630
      %v632 = vpop.f32.mrb[0].mxu0
      %633 = vmatprep.mubr.f32.mxu0 0.0
      %634 = vmatmul.mubr.f32.gmra.mrb[0].mxu0 %v417
      %v635 = vpop.f32.mrb[0].mxu0
      %v636 = vadd.f32 %v384, %v635
      %v637 = vpop.f32.mrb[0].mxu0
      %638 = vmatprep.mubr.f32.mxu0 0.0
      %639 = vmatmul.mubr.f32.gmra.mrb[0].mxu0 %v420
      %v640 = vpop.f32.mrb[0].mxu0
      %v641 = vadd.f32 %v389, %v640
      %v642 = vpop.f32.mrb[0].mxu0
      %643 = vmatprep.mubr.f32.mxu0 0.0
      %644 = vmatmul.mubr.f32.gmra.mrb[0].mxu0 %v423
      %v645 = vpop.f32.mrb[0].mxu0
      %v646 = vadd.f32 %v394, %v645
      %v647 = vpop.f32.mrb[0].mxu0
      %648 = vmatprep.mubr.f32.mxu0 0.0
      %649 = vmatmul.mubr.f32.gmra.mrb[0].mxu0 %v426
      %v650 = vpop.f32.mrb[0].mxu0
      %v651 = vadd.f32 %v399, %v650
      %v652 = vpop.f32.mrb[0].mxu0
      %653 = vmatprep.mubr.f32.mxu0 0.0
      %654 = vmatmul.mubr.f32.gmra.mrb[0].mxu0 %v429
      %v655 = vpop.f32.mrb[0].mxu0
      %v656 = vadd.f32 %v404, %v655
      %v657 = vpop.f32.mrb[0].mxu0
      %658 = vdwg.mxu0
      %vm659 = vcmp.ge.f32.partialorder %v508, 0.0
      %vm660 = vcmp.ge.f32.partialorder %v510, 0.0
      %vm661 = vcmp.ge.f32.partialorder %v621, 0.0
      %vm662 = vcmp.ge.f32.partialorder %v514, 0.0
      %vm663 = vcmp.ge.f32.partialorder %v516, 0.0
      %vm664 = vcmp.ge.f32.partialorder %v626, 0.0
      %vm665 = vcmp.ge.f32.partialorder %v520, 0.0
      %vm666 = vcmp.ge.f32.partialorder %v522, 0.0
      %vm667 = vcmp.ge.f32.partialorder %v631, 0.0
      %vm668 = vcmp.ge.f32.partialorder %v526, 0.0
      %vm669 = vcmp.ge.f32.partialorder %v528, 0.0
      %vm670 = vcmp.ge.f32.partialorder %v636, 0.0
      %vm671 = vcmp.ge.f32.partialorder %v532, 0.0
      %vm672 = vcmp.ge.f32.partialorder %v534, 0.0
      %vm673 = vcmp.ge.f32.partialorder %v641, 0.0
      %vm674 = vcmp.ge.f32.partialorder %v538, 0.0
      %vm675 = vcmp.ge.f32.partialorder %v540, 0.0
      %vm676 = vcmp.ge.f32.partialorder %v646, 0.0
      %vm677 = vcmp.ge.f32.partialorder %v544, 0.0
      %vm678 = vcmp.ge.f32.partialorder %v546, 0.0
      %vm679 = vcmp.ge.f32.partialorder %v651, 0.0
      %vm680 = vcmp.ge.f32.partialorder %v550, 0.0
      %vm681 = vcmp.ge.f32.partialorder %v552, 0.0
      %vm682 = vcmp.ge.f32.partialorder %v656, 0.0
      %v683 = vmul.f32 %v508, 0.2
      %v684 = vmul.f32 %v510, 0.2
      %v685 = vmul.f32 %v621, 0.2
      %v686 = vmul.f32 %v514, 0.2
      %v687 = vmul.f32 %v516, 0.2
      %v688 = vmul.f32 %v626, 0.2
      %v689 = vmul.f32 %v520, 0.2
      %v690 = vmul.f32 %v522, 0.2
      %v691 = vmul.f32 %v631, 0.2
      %v692 = vmul.f32 %v526, 0.2
      %v693 = vmul.f32 %v528, 0.2
      %v694 = vmul.f32 %v636, 0.2
      %v695 = vmul.f32 %v532, 0.2
      %v696 = vmul.f32 %v534, 0.2
      %v697 = vmul.f32 %v641, 0.2
      %v698 = vmul.f32 %v538, 0.2
      %v699 = vmul.f32 %v540, 0.2
      %v700 = vmul.f32 %v646, 0.2
      %v701 = vmul.f32 %v544, 0.2
      %v702 = vmul.f32 %v546, 0.2
      %v703 = vmul.f32 %v651, 0.2
      %v704 = vmul.f32 %v550, 0.2
      %v705 = vmul.f32 %v552, 0.2
      %v706 = vmul.f32 %v656, 0.2
      %v707 = vsel %vm659, %v508, %v683
      %v708 = vsel %vm660, %v510, %v684
      %v709 = vsel %vm661, %v621, %v685
      %v710 = vsel %vm662, %v514, %v686
      %v711 = vsel %vm663, %v516, %v687
      %v712 = vsel %vm664, %v626, %v688
      %v713 = vsel %vm665, %v520, %v689
      %v714 = vsel %vm666, %v522, %v690
      %v715 = vsel %vm667, %v631, %v691
      %v716 = vsel %vm668, %v526, %v692
      %v717 = vsel %vm669, %v528, %v693
      %v718 = vsel %vm670, %v636, %v694
      %v719 = vsel %vm671, %v532, %v695
      %v720 = vsel %vm672, %v534, %v696
      %v721 = vsel %vm673, %v641, %v697
      %v722 = vsel %vm674, %v538, %v698
      %v723 = vsel %vm675, %v540, %v699
      %v724 = vsel %vm676, %v646, %v700
      %v725 = vsel %vm677, %v544, %v701
      %v726 = vsel %vm678, %v546, %v702
      %v727 = vsel %vm679, %v651, %v703
      %v728 = vsel %vm680, %v550, %v704
      %v729 = vsel %vm681, %v552, %v705
      %v730 = vsel %vm682, %v656, %v706
      %v731 = vld [vmem:[%s4] sm:$0x7]
      %v733 = vlaneseq
      %v734 = vshrl.u32 %v733, 7
      %v735 = vsub.s32 0, %v734
      %v736 = vrot.slane %v731, %v735
      %v737 = vlaneseq
      %v738 = vshrl.u32 %v737, 7
      %v739 = vsub.s32 1, %v738
      %v740 = vrot.slane %v731, %v739
      %v741 = vlaneseq
      %v742 = vshrl.u32 %v741, 7
      %v743 = vsub.s32 2, %v742
      %v744 = vrot.slane %v731, %v743
      %v748 = vmul.f32 %v707, %v736
      %v749 = vmul.f32 %v708, %v740
      %v750 = vmul.f32 %v709, %v744
      %v751 = vmul.f32 %v710, %v736
      %v752 = vmul.f32 %v711, %v740
      %v753 = vmul.f32 %v712, %v744
      %v754 = vmul.f32 %v713, %v736
      %v755 = vmul.f32 %v714, %v740
      %v756 = vmul.f32 %v715, %v744
      %v757 = vmul.f32 %v716, %v736
      %v758 = vmul.f32 %v717, %v740
      %v759 = vmul.f32 %v718, %v744
      %v760 = vmul.f32 %v719, %v736
      %v761 = vmul.f32 %v720, %v740
      %v762 = vmul.f32 %v721, %v744
      %v763 = vmul.f32 %v722, %v736
      %v764 = vmul.f32 %v723, %v740
      %v765 = vmul.f32 %v724, %v744
      %v766 = vmul.f32 %v725, %v736
      %v767 = vmul.f32 %v726, %v740
      %v768 = vmul.f32 %v727, %v744
      %v769 = vmul.f32 %v728, %v736
      %v770 = vmul.f32 %v729, %v740
      %v771 = vmul.f32 %v730, %v744
      %v772 = vpack.c.bf16 %v751, %v748
      %v773 = vpack.c.bf16 %v752, %v749
      %v774 = vpack.c.bf16 %v753, %v750
      %v775 = vpack.c.bf16 %v757, %v754
      %v776 = vpack.c.bf16 %v758, %v755
      %v777 = vpack.c.bf16 %v759, %v756
      %v778 = vpack.c.bf16 %v763, %v760
      %v779 = vpack.c.bf16 %v764, %v761
      %v780 = vpack.c.bf16 %v765, %v762
      %v781 = vpack.c.bf16 %v769, %v766
      %v782 = vpack.c.bf16 %v770, %v767
      %v783 = vpack.c.bf16 %v771, %v768
      %796 = vrot.lane.b32.xlu0 %v772, 1
      %v797 = vpop.permute.xlu0 %796
      %798 = vrot.lane.b32.xlu0 %v773, 1
      %v799 = vpop.permute.xlu0 %798
      %800 = vrot.lane.b32.xlu0 %v774, 1
      %v801 = vpop.permute.xlu0 %800
      %802 = vrot.lane.b32.xlu0 %v775, 1
      %v803 = vpop.permute.xlu0 %802
      %804 = vrot.lane.b32.xlu0 %v776, 1
      %v805 = vpop.permute.xlu0 %804
      %806 = vrot.lane.b32.xlu0 %v777, 1
      %v807 = vpop.permute.xlu0 %806
      %808 = vrot.lane.b32.xlu0 %v778, 1
      %v809 = vpop.permute.xlu0 %808
      %810 = vrot.lane.b32.xlu0 %v779, 1
      %v811 = vpop.permute.xlu0 %810
      %812 = vrot.lane.b32.xlu0 %v780, 1
      %v813 = vpop.permute.xlu0 %812
      %814 = vrot.lane.b32.xlu0 %v781, 1
      %v815 = vpop.permute.xlu0 %814
      %816 = vrot.lane.b32.xlu0 %v782, 1
      %v817 = vpop.permute.xlu0 %816
      %818 = vrot.lane.b32.xlu0 %v783, 1
      %v819 = vpop.permute.xlu0 %818
      %vm820 = vcmask 7168
      %v821 = vsel %vm820, %v797, %v799
      %v822 = vsel %vm820, %v799, %v801
      %v823 = vsel %vm820, %v803, %v805
      %v824 = vsel %vm820, %v805, %v807
      %v825 = vsel %vm820, %v809, %v811
      %v826 = vsel %vm820, %v811, %v813
      %v827 = vsel %vm820, %v815, %v817
      %v828 = vsel %vm820, %v817, %v819
      %vm841 = vcmask 1047560
      %842 = vst.msk [vmem:[#allocation3] sm:$0xff] %vm841, %v797
      %843 = vst [vmem:[#allocation3 + $0x8] sm:$0xff] %v821
      %vm844 = vcmask 564224
      %845 = vst.msk [vmem:[#allocation3 + $0x10] sm:$0xff] %vm844, %v822
      %846 = vst.msk [vmem:[#allocation3 + $0x18] sm:$0xff] %vm841, %v803
      %847 = vst [vmem:[#allocation3 + $0x20] sm:$0xff] %v823
      %848 = vst.msk [vmem:[#allocation3 + $0x28] sm:$0xff] %vm844, %v824
      %849 = vst.msk [vmem:[#allocation3 + $0x30] sm:$0xff] %vm841, %v809
      %850 = vst [vmem:[#allocation3 + $0x38] sm:$0xff] %v825
      %851 = vst.msk [vmem:[#allocation3 + $0x40] sm:$0xff] %vm844, %v826
      %852 = vst.msk [vmem:[#allocation3 + $0x48] sm:$0xff] %vm841, %v815
      %853 = vst [vmem:[#allocation3 + $0x50] sm:$0xff] %v827
      %854 = vst.msk [vmem:[#allocation3 + $0x58] sm:$0xff] %vm844, %v828
      %vm855 = vcmask 7168
      %856 = vst.msk [vmem:[#allocation3] sm:$0xff] %vm855, 0
      %857 = vst.msk [vmem:[#allocation3 + $0x18] sm:$0xff] %vm855, 0
      %858 = vst.msk [vmem:[#allocation3 + $0x30] sm:$0xff] %vm855, 0
      %859 = vst.msk [vmem:[#allocation3 + $0x48] sm:$0xff] %vm855, 0
      %vm860 = vcmask 572968
      %861 = vst.msk [vmem:[#allocation3 + $0x10] sm:$0xff] %vm860, 0
      %862 = vst.msk [vmem:[#allocation3 + $0x28] sm:$0xff] %vm860, 0
      %863 = vst.msk [vmem:[#allocation3 + $0x40] sm:$0xff] %vm860, 0
      %864 = vst.msk [vmem:[#allocation3 + $0x58] sm:$0xff] %vm860, 0
      %vm865 = vcmask 154632
      %866 = vst.msk [vmem:[#allocation3] sm:$0xff] %vm865, 0
      %867 = vst.msk [vmem:[#allocation3 + $0x18] sm:$0xff] %vm865, 0
      %868 = vst.msk [vmem:[#allocation3 + $0x30] sm:$0xff] %vm865, 0
      %869 = vst.msk [vmem:[#allocation3 + $0x48] sm:$0xff] %vm865, 0
      %vm870 = vcmask 564632
      %871 = vst.msk [vmem:[#allocation3 + $0x10] sm:$0xff] %vm870, 0
      %872 = vst.msk [vmem:[#allocation3 + $0x28] sm:$0xff] %vm870, 0
      %873 = vst.msk [vmem:[#allocation3 + $0x40] sm:$0xff] %vm870, 0
      %874 = vst.msk [vmem:[#allocation3 + $0x58] sm:$0xff] %vm870, 0
      %v875 = vld [vmem:[%s3] sm:$0xf]
      %v876 = vld [vmem:[%s3 + $0x4] sm:$0x1]
      %v877 = vld [vmem:[#allocation3] sm:$0xff]
      %v878 = vld [vmem:[#allocation3 + $0x8] sm:$0xff]
      %v879 = vld [vmem:[#allocation3 + $0x10] sm:$0xff]
      %v880 = vld [vmem:[#allocation3 + $0x18] sm:$0xff]
      %v881 = vld [vmem:[#allocation3 + $0x20] sm:$0xff]
      %v882 = vld [vmem:[#allocation3 + $0x28] sm:$0xff]
      %v883 = vld [vmem:[#allocation3 + $0x30] sm:$0xff]
      %v884 = vld [vmem:[#allocation3 + $0x38] sm:$0xff]
      %v885 = vld [vmem:[#allocation3 + $0x40] sm:$0xff]
      %v886 = vld [vmem:[#allocation3 + $0x48] sm:$0xff]
      %v887 = vld [vmem:[#allocation3 + $0x50] sm:$0xff]
      %v888 = vld [vmem:[#allocation3 + $0x58] sm:$0xff]
      %v891 = vunpack.c.l.b16 %v875
      %v892 = vunpack.c.l.b16 %v876
      %v893 = vpack.c.b16 %v892, %v891
      %vm894 = vcmask 523264
      %v896 = vsel %vm894, %v893, 0
      %898 = vmatprep.subr.bf16.mxu0 %v878
      %899 = vmatpush1.bf16.msra.mxu0 %v877
      %900 = vmatprep.subr.bf16.mxu0 %v881
      %901 = vmatpush1.bf16.msra.mxu0 %v880
      %902 = vmatprep.subr.bf16.mxu0 %v884
      %903 = vmatpush1.bf16.msra.mxu0 %v883
      %904 = vmatprep.subr.bf16.mxu0 %v887
      %905 = vmatpush1.bf16.msra.mxu0 %v886
      %906 = vmatprep.subr.bf16.mxu0 0
      %907 = vmatpush1.bf16.msra.mxu0 0
      %908 = vmatprep.subr.bf16.mxu0 0
      %909 = vmatpush1.bf16.msra.mxu0 0
      %910 = vmatprep.subr.bf16.mxu0 0
      %911 = vmatpush1.bf16.msra.mxu0 0
      %912 = vmatprep.subr.bf16.mxu0 0
      %913 = vmatpush1.bf16.msra.mxu0 0
      %914 = vmatprep.subr.bf16.mxu0 0
      %915 = vmatpush1.bf16.msra.mxu0 0
      %916 = vmatprep.subr.bf16.mxu0 0
      %917 = vmatpush1.bf16.msra.mxu0 0
      %918 = vmatprep.subr.bf16.mxu0 0
      %919 = vmatpush1.bf16.msra.mxu0 0
      %920 = vmatprep.subr.bf16.mxu0 0
      %921 = vmatpush1.bf16.msra.mxu0 0
      %922 = vmatprep.subr.bf16.mxu0 0
      %923 = vmatpush1.bf16.msra.mxu0 0
      %924 = vmatprep.subr.bf16.mxu0 0
      %925 = vmatpush1.bf16.msra.mxu0 0
      %926 = vmatprep.subr.bf16.mxu0 0
      %927 = vmatpush1.bf16.msra.mxu0 0
      %928 = vmatprep.subr.bf16.mxu0 0
      %929 = vmatpush1.bf16.msra.mxu0 0
      %930 = vmatprep.mubr.bf16.mxu0 0
      %931 = vmatmul.mubr.bf16.gmra.mrb[0].mxu0 %v896
      %v932 = vpop.f32.mrb[0].mxu0
      %v933 = vadd.f32 0.0, %v932
      %v934 = vpop.f32.mrb[0].mxu0
      %v935 = vadd.f32 0.0, %v934
      %v936 = vpop.f32.mrb[0].mxu0
      %v937 = vadd.f32 0.0, %v936
      %v938 = vpop.f32.mrb[0].mxu0
      %v939 = vadd.f32 0.0, %v938
      %940 = vdwg.mxu0
      %941 = vmatprep.subr.bf16.mxu0 0
      %942 = vmatpush1.bf16.msra.mxu0 %v879
      %943 = vmatprep.subr.bf16.mxu0 0
      %944 = vmatpush1.bf16.msra.mxu0 %v882
      %945 = vmatprep.subr.bf16.mxu0 0
      %946 = vmatpush1.bf16.msra.mxu0 %v885
      %947 = vmatprep.subr.bf16.mxu0 0
      %948 = vmatpush1.bf16.msra.mxu0 %v888
      %949 = vmatprep.subr.bf16.mxu0 0
      %950 = vmatpush1.bf16.msra.mxu0 0
      %951 = vmatprep.subr.bf16.mxu0 0
      %952 = vmatpush1.bf16.msra.mxu0 0
      %953 = vmatprep.subr.bf16.mxu0 0
      %954 = vmatpush1.bf16.msra.mxu0 0
      %955 = vmatprep.subr.bf16.mxu0 0
      %956 = vmatpush1.bf16.msra.mxu0 0
      %957 = vmatprep.subr.bf16.mxu0 0
      %958 = vmatpush1.bf16.msra.mxu0 0
      %959 = vmatprep.subr.bf16.mxu0 0
      %960 = vmatpush1.bf16.msra.mxu0 0
      %961 = vmatprep.subr.bf16.mxu0 0
      %962 = vmatpush1.bf16.msra.mxu0 0
      %963 = vmatprep.subr.bf16.mxu0 0
      %964 = vmatpush1.bf16.msra.mxu0 0
      %965 = vmatprep.subr.bf16.mxu0 0
      %966 = vmatpush1.bf16.msra.mxu0 0
      %967 = vmatprep.subr.bf16.mxu0 0
      %968 = vmatpush1.bf16.msra.mxu0 0
      %969 = vmatprep.subr.bf16.mxu0 0
      %970 = vmatpush1.bf16.msra.mxu0 0
      %971 = vmatprep.subr.bf16.mxu0 0
      %972 = vmatpush1.bf16.msra.mxu0 0
      %973 = vmatprep.mubr.bf16.mxu0 0
      %974 = vmatmul.mubr.bf16.gmra.mrb[0].mxu0 %v896
      %v975 = vpop.f32.mrb[0].mxu0
      %v976 = vadd.f32 0.0, %v975
      %v977 = vpop.f32.mrb[0].mxu0
      %v978 = vpop.f32.mrb[0].mxu0
      %v979 = vadd.f32 0.0, %v978
      %v980 = vpop.f32.mrb[0].mxu0
      %981 = vdwg.mxu0
      %v985 = vrot.slane %v933, 1
      %v986 = vrot.slane %v935, 1
      %v987 = vrot.slane %v976, 1
      %988 = vrot.lane.b32.xlu0 %v985, 127
      %v989 = vpop.permute.xlu0 %988
      %990 = vrot.lane.b32.xlu0 %v986, 127
      %v991 = vpop.permute.xlu0 %990
      %992 = vrot.lane.b32.xlu0 %v987, 127
      %v993 = vpop.permute.xlu0 %992
      %v994 = vsel %vm261, %v989, %v991
      %v995 = vsel %vm261, %v991, %v993
      %v999 = vadd.f32 %v933, %v994
      %v1000 = vadd.f32 %v935, %v995
      %v1001 = vadd.f32 %v976, %v993
      %v1002 = vrot.slane %v933, 2
      %v1003 = vrot.slane %v935, 2
      %v1004 = vrot.slane %v976, 2
      %1005 = vrot.lane.b32.xlu0 %v1002, 126
      %v1006 = vpop.permute.xlu0 %1005
      %1007 = vrot.lane.b32.xlu0 %v1003, 126
      %v1008 = vpop.permute.xlu0 %1007
      %1009 = vrot.lane.b32.xlu0 %v1004, 126
      %v1010 = vpop.permute.xlu0 %1009
      %v1011 = vsel %vm272, %v1006, %v1008
      %v1012 = vsel %vm272, %v1008, %v1010
      %v1016 = vadd.f32 %v999, %v1011
      %v1017 = vadd.f32 %v1000, %v1012
      %v1018 = vadd.f32 %v1001, %v1010
      %v1019 = vrot.slane %v933, 3
      %v1020 = vrot.slane %v935, 3
      %v1021 = vrot.slane %v976, 3
      %1022 = vrot.lane.b32.xlu0 %v1019, 110
      %v1023 = vpop.permute.xlu0 %1022
      %1024 = vrot.lane.b32.xlu0 %v1020, 110
      %v1025 = vpop.permute.xlu0 %1024
      %1026 = vrot.lane.b32.xlu0 %v1021, 110
      %v1027 = vpop.permute.xlu0 %1026
      %v1028 = vsel %vm283, %v1023, %v1025
      %v1029 = vsel %vm283, %v1025, %v1027
      %v1033 = vadd.f32 %v1016, %v1028
      %v1034 = vadd.f32 %v1017, %v1029
      %v1035 = vadd.f32 %v1018, %v1027
      %v1036 = vrot.slane %v933, 4
      %v1037 = vrot.slane %v935, 4
      %v1038 = vrot.slane %v976, 4
      %1039 = vrot.lane.b32.xlu0 %v1036, 109
      %v1040 = vpop.permute.xlu0 %1039
      %1041 = vrot.lane.b32.xlu0 %v1037, 109
      %v1042 = vpop.permute.xlu0 %1041
      %1043 = vrot.lane.b32.xlu0 %v1038, 109
      %v1044 = vpop.permute.xlu0 %1043
      %v1045 = vsel %vm294, %v1040, %v1042
      %v1046 = vsel %vm294, %v1042, %v1044
      %v1050 = vadd.f32 %v1033, %v1045
      %v1051 = vadd.f32 %v1034, %v1046
      %v1052 = vadd.f32 %v1035, %v1044
      %v1053 = vrot.slane %v933, 5
      %v1054 = vrot.slane %v935, 5
      %v1055 = vrot.slane %v976, 5
      %1056 = vrot.lane.b32.xlu0 %v1053, 108
      %v1057 = vpop.permute.xlu0 %1056
      %1058 = vrot.lane.b32.xlu0 %v1054, 108
      %v1059 = vpop.permute.xlu0 %1058
      %1060 = vrot.lane.b32.xlu0 %v1055, 108
      %v1061 = vpop.permute.xlu0 %1060
      %v1062 = vsel %vm305, %v1057, %v1059
      %v1063 = vsel %vm305, %v1059, %v1061
      %v1067 = vadd.f32 %v1050, %v1062
      %v1068 = vadd.f32 %v1051, %v1063
      %v1069 = vadd.f32 %v1052, %v1061
      %v1070 = vrot.slane %v933, 6
      %v1071 = vrot.slane %v935, 6
      %v1072 = vrot.slane %v976, 6
      %1073 = vrot.lane.b32.xlu0 %v1070, 92
      %v1074 = vpop.permute.xlu0 %1073
      %1075 = vrot.lane.b32.xlu0 %v1071, 92
      %v1076 = vpop.permute.xlu0 %1075
      %1077 = vrot.lane.b32.xlu0 %v1072, 92
      %v1078 = vpop.permute.xlu0 %1077
      %v1079 = vsel %vm316, %v1074, %v1076
      %v1080 = vsel %vm316, %v1076, %v1078
      %v1084 = vadd.f32 %v1067, %v1079
      %v1085 = vadd.f32 %v1068, %v1080
      %v1086 = vadd.f32 %v1069, %v1078
      %v1087 = vrot.slane %v933, 7
      %v1088 = vrot.slane %v935, 7
      %v1089 = vrot.slane %v976, 7
      %1090 = vrot.lane.b32.xlu0 %v1087, 91
      %v1091 = vpop.permute.xlu0 %1090
      %1092 = vrot.lane.b32.xlu0 %v1088, 91
      %v1093 = vpop.permute.xlu0 %1092
      %1094 = vrot.lane.b32.xlu0 %v1089, 91
      %v1095 = vpop.permute.xlu0 %1094
      %v1096 = vsel %vm327, %v1091, %v1093
      %v1097 = vsel %vm327, %v1093, %v1095
      %v1101 = vadd.f32 %v1084, %v1096
      %v1102 = vadd.f32 %v1085, %v1097
      %v1103 = vadd.f32 %v1086, %v1095
      %1107 = vrot.lane.b32.xlu0 %v937, 90
      %v1108 = vpop.permute.xlu0 %1107
      %1109 = vrot.lane.b32.xlu0 %v939, 90
      %v1110 = vpop.permute.xlu0 %1109
      %1111 = vrot.lane.b32.xlu0 %v979, 90
      %v1112 = vpop.permute.xlu0 %1111
      %v1113 = vsel %vm338, %v1108, %v1110
      %v1114 = vsel %vm338, %v1110, %v1112
      %v1118 = vadd.f32 %v1101, %v1113
      %v1119 = vadd.f32 %v1102, %v1114
      %v1120 = vadd.f32 %v1103, %v1112
      %s1121 = sld [smem:[#allocation4]]
      %v1122 = vstv %s1121
      %v1123 = vadd.f32 %v1118, %v1122
      %v1124 = vadd.f32 %v1119, %v1122
      %v1125 = vadd.f32 %v1120, %v1122
      %v1129 = vcombine.low %v1123, %v1124
      %v1131 = vunpack.c.l.s4 1966171168
      %v1132 = vunpack.c.0.s8 %v1131
      %v1133 = vlaneseq
      %v1134 = vshrl.u32 %v1133, 7
      %v1135 = vsub.s32 %v1132, %v1134
      %v1136 = vrot.slane %v1129, %v1135
      %v1138 = vunpack.c.l.s4 1966171168
      %v1139 = vunpack.c.0.s8 %v1138
      %v1140 = vlaneseq
      %v1141 = vshrl.u32 %v1140, 7
      %v1142 = vsub.s32 %v1139, %v1141
      %v1143 = vrot.slane %v1125, %v1142
      %v1144 = vcombine.low %v1136, %v1143
      %v1146 = vunpack.c.l.s4 1966171168
      %v1147 = vunpack.c.0.s8 %v1146
      %v1148 = vlaneseq
      %v1149 = vshrl.u32 %v1148, 7
      %v1150 = vsub.s32 %v1147, %v1149
      %v1151 = vrot.slane %v1144, %v1150
      %vm1153 = vcmp.lt.s32.totalorder %v250, 288
      %vm1154 = vmand %vm251, %vm1153
      %1155 = vst.msk [vmem:[%s247] sm:$0x7] %vm1154, %v1151
      %p1156 = scmp.lt.s32.totalorder %s18, 1
      %s1157 = scalar_select %p1156, %s18, 1
      %s1158 = smul.addr %s1157, 3
      %s1159 = scalar_lea.vmem %s6, %s1158
      // Predicated region
      $region45: #{dncnn_forward.1} parent=43 // pred_check
        %p1160 = pneg %p167
      $region46: #{dncnn_forward.1} parent=43 // pred_check_branch
        %1162 = sbr.rel (%p1160) target = $region48
      $region47: #{dncnn_forward.1} parent=43 // pred_region
        _
      $region48: #{dncnn_forward.1} parent=43 // pred_fallthru
        _
    $region44: #{dncnn_forward.1} parent=5 // pred_fallthru
      _
    %p1163 = scmp.le.s32.totalorder 2, %s13
    // Predicated region
    $region49: #{dncnn_forward.1} parent=5 // pred_check
      %p1164 = pneg %p1163
    $region50: #{dncnn_forward.1} parent=5 // pred_check_branch
      %1166 = sbr.rel (%p1164) target = $region52
    $region51: #{dncnn_forward.1} parent=5 // pred_region
      %s1167 = ssub.s32 %s13, 2
      // Predicated region
      $region53: #{dncnn_forward.1} parent=51 // pred_check
        %p1168 = pneg %p173
      $region54: #{dncnn_forward.1} parent=51 // pred_check_branch
        %1170 = sbr.rel (%p1168) target = $region56
      $region55: #{dncnn_forward.1} parent=51 // pred_region
        %p1171 = scmp.lt.s32.totalorder %s19, 1
        %s1172 = scalar_select %p1171, %s19, 1
        %s1173 = smul.addr %s1172, 3
        %s1174 = scalar_lea.vmem %s6, %s1173
      $region56: #{dncnn_forward.1} parent=51 // pred_fallthru
        _
    $region52: #{dncnn_forward.1} parent=5 // pred_fallthru
      _
  $region6: #{dncnn_forward.1} parent=0 // loop_footer
    %s17 = sadd.s32 1, %s13
  $region7: #{dncnn_forward.1} parent=0 // loop_footer_branch
    %12 = sbr.rel target = $region3
  $region8: #{dncnn_forward.1} parent=0 // loop_exit
    _

</llo_original>
